<compile_context>
chip_gen: v6e
topology: v6e:2x2x1
jax: 0.10.0
libtpu: 0.0.40
codegen_flags: <defaults>
</compile_context>

<pallas_src>
import functools

import jax
import jax.numpy as jnp
from jax.experimental import pallas as pl
from jax.experimental.pallas import tpu as pltpu


def _actor_fwd_kernel(obs_ref, w1_ref, b1_ref, g_ref, beta_ref,
                      w2_ref, b2_ref, w3_ref, b3_ref, w4_ref, b4_ref,
                      std_ref, mu_ref, std_out_ref, *,
                      action_scale, action_shift, eps):
    """One batch tile of the full Actor forward.

    obs_ref: (bm, repr_dim) VMEM block.
    w*/b*/g/beta: full weight/bias blocks resident in VMEM (same every step).
    std_ref: (1, 1) f32 scalar in SMEM.
    mu_ref, std_out_ref: (bm, action_dim) VMEM output blocks.
    """
    obs = obs_ref[...].astype(jnp.float32)

    # ---- trunk: Linear -> LayerNorm -> Tanh (all intermediates stay on-chip) ----
    h = jnp.dot(obs, w1_ref[...], preferred_element_type=jnp.float32) + b1_ref[...]
    mean = jnp.mean(h, axis=-1, keepdims=True)
    var = jnp.mean(jnp.square(h - mean), axis=-1, keepdims=True)
    h = (h - mean) * jax.lax.rsqrt(var + eps)
    h = h * g_ref[...] + beta_ref[...]
    h = jnp.tanh(h)

    # ---- policy MLP: Linear -> ReLU -> Linear -> ReLU -> Linear ----
    x = jnp.dot(h, w2_ref[...], preferred_element_type=jnp.float32) + b2_ref[...]
    x = jnp.maximum(x, 0.0)
    x = jnp.dot(x, w3_ref[...], preferred_element_type=jnp.float32) + b3_ref[...]
    x = jnp.maximum(x, 0.0)
    mu = jnp.dot(x, w4_ref[...], preferred_element_type=jnp.float32) + b4_ref[...]

    # ---- squash + affine, and the fused std broadcast ----
    mu = jnp.tanh(mu) * action_scale + action_shift
    mu_ref[...] = mu.astype(mu_ref.dtype)
    std_out_ref[...] = (jnp.ones_like(mu) * std_ref[0, 0]).astype(std_out_ref.dtype)


def actor_forward(obs, params, std, *, action_scale=1.0, action_shift=0.0, eps=1e-5):
    """obs: (B, repr_dim) f32.  params: dict of weights.  std: python/traced scalar.
    Returns (mu, std_arr), the parameters of the TruncatedNormal the module builds."""
    w1, b1, g, beta = params["w1"], params["b1"], params["ln_g"], params["ln_b"]
    w2, b2 = params["w2"], params["b2"]
    w3, b3 = params["w3"], params["b3"]
    w4, b4 = params["w4"], params["b4"]

    B, R = obs.shape
    F = w1.shape[1]
    H = w2.shape[1]
    A = w4.shape[1]

    bm = min(B, 128)                       # batch tile; amortizes per-step overhead
    grid = (pl.cdiv(B, bm),)

    std_arr = jnp.asarray(std, dtype=jnp.float32).reshape(1, 1)

    full_block = lambda arr: pl.BlockSpec(arr.shape, lambda i: (0,) * arr.ndim)

    flops = 2 * B * (R * F + F * H + H * H + H * A)
    transcendentals = B * (F + A + 1)
    bytes_accessed = 4 * (
        obs.size + w1.size + b1.size + g.size + beta.size
        + w2.size + b2.size + w3.size + b3.size + w4.size + b4.size
        + 2 * B * A
    )

    kernel = functools.partial(
        _actor_fwd_kernel,
        action_scale=float(action_scale),
        action_shift=float(action_shift),
        eps=float(eps),
    )

    mu, std_out = pl.pallas_call(
        kernel,
        out_shape=(
            jax.ShapeDtypeStruct((B, A), obs.dtype),
            jax.ShapeDtypeStruct((B, A), obs.dtype),
        ),
        grid_spec=pltpu.PrefetchScalarGridSpec(
            num_scalar_prefetch=0,
            grid=grid,
            in_specs=[
                pl.BlockSpec((bm, R), lambda i: (i, 0)),   # obs (tiled over batch)
                full_block(w1), full_block(b1),
                full_block(g), full_block(beta),
                full_block(w2), full_block(b2),
                full_block(w3), full_block(b3),
                full_block(w4), full_block(b4),
                pl.BlockSpec(memory_space=pltpu.MemorySpace.SMEM),  # std scalar
            ],
            out_specs=[
                pl.BlockSpec((bm, A), lambda i: (i, 0)),
                pl.BlockSpec((bm, A), lambda i: (i, 0)),
            ],
        ),
        compiler_params=pltpu.CompilerParams(
            dimension_semantics=("parallel",),             # v7x: shard batch over 2 TCs
        ),
        cost_estimate=pl.CostEstimate(
            flops=flops, transcendentals=transcendentals, bytes_accessed=bytes_accessed
        ),
    )(obs, w1, b1, g, beta, w2, b2, w3, b3, w4, b4, std_arr)
    return mu, std_out


class Actor:
    """JAX/Pallas mirror of the PyTorch Actor module's forward pass.

    forward(obs, std) returns (mu, std_arr) — the parameters of the
    TruncatedNormal distribution the PyTorch module constructs."""
    # TODO(synk): utils.TruncatedNormal (sampling / log_prob / clamping) has no
    # Pallas equivalent here; we return its (mu, std) parameters instead.

    def __init__(self, repr_dim, action_shape, feature_dim, hidden_dim, key):
        self.action_shift = 0.0
        self.action_scale = 1.0
        a = action_shape[0]
        ks = jax.random.split(key, 4)

        def linear_init(k, fan_in, fan_out):
            # stand-in for utils.weight_init (init does not affect forward semantics)
            w = jax.random.normal(k, (fan_in, fan_out), jnp.float32) / jnp.sqrt(fan_in)
            b = jnp.zeros((1, fan_out), jnp.float32)
            return w, b

        w1, b1 = linear_init(ks[0], repr_dim, feature_dim)
        w2, b2 = linear_init(ks[1], feature_dim, hidden_dim)
        w3, b3 = linear_init(ks[2], hidden_dim, hidden_dim)
        w4, b4 = linear_init(ks[3], hidden_dim, a)
        self.params = dict(
            w1=w1, b1=b1,
            ln_g=jnp.ones((1, feature_dim), jnp.float32),
            ln_b=jnp.zeros((1, feature_dim), jnp.float32),
            w2=w2, b2=b2, w3=w3, b3=b3, w4=w4, b4=b4,
        )

    def forward(self, obs, std):
        return actor_forward(
            obs, self.params, std,
            action_scale=self.action_scale, action_shift=self.action_shift,
        )

    __call__ = forward


def _actor_ref(obs, p, std, eps=1e-5):
    """Pure-JAX reference (same math as the PyTorch module)."""
    h = obs @ p["w1"] + p["b1"]
    mean = h.mean(-1, keepdims=True)
    var = ((h - mean) ** 2).mean(-1, keepdims=True)
    h = (h - mean) * jax.lax.rsqrt(var + eps) * p["ln_g"] + p["ln_b"]
    h = jnp.tanh(h)
    x = jax.nn.relu(h @ p["w2"] + p["b2"])
    x = jax.nn.relu(x @ p["w3"] + p["b3"])
    mu = jnp.tanh(x @ p["w4"] + p["b4"])
    return mu, jnp.ones_like(mu) * std


if __name__ == "__main__":
    key = jax.random.PRNGKey(0)
    k_obs, k_params = jax.random.split(key)

    batch, repr_dim, feature_dim, hidden_dim = 2, 64, 32, 32
    action_shape = (4,)
    std = 0.1

    actor = Actor(repr_dim, action_shape, feature_dim, hidden_dim, k_params)
    obs = jax.random.normal(k_obs, (batch, repr_dim), dtype=jnp.float32)

    mu, std_out = actor(obs, std)
    mu = jax.block_until_ready(mu)
    std_out = jax.block_until_ready(std_out)

    mu_ref, std_ref = _actor_ref(obs, actor.params, std)
    assert mu.shape == (batch, action_shape[0]) and std_out.shape == mu.shape
    assert jnp.allclose(mu, mu_ref, atol=1e-5, rtol=1e-5), "mu mismatch vs reference"
    assert jnp.allclose(std_out, std_ref, atol=1e-6), "std mismatch vs reference"
    print("KERNEL_OK")
</pallas_src>

<mosaic_0001>
module attributes {stable_mosaic.version = 11 : i64} {
  func.func @_actor_fwd_kernel(%arg0: i32, %arg1: memref<2x64xf32, #tpu.memory_space<vmem>>, %arg2: memref<64x32xf32, #tpu.memory_space<vmem>>, %arg3: memref<1x32xf32, #tpu.memory_space<vmem>>, %arg4: memref<1x32xf32, #tpu.memory_space<vmem>>, %arg5: memref<1x32xf32, #tpu.memory_space<vmem>>, %arg6: memref<32x32xf32, #tpu.memory_space<vmem>>, %arg7: memref<1x32xf32, #tpu.memory_space<vmem>>, %arg8: memref<32x32xf32, #tpu.memory_space<vmem>>, %arg9: memref<1x32xf32, #tpu.memory_space<vmem>>, %arg10: memref<32x4xf32, #tpu.memory_space<vmem>>, %arg11: memref<1x4xf32, #tpu.memory_space<vmem>>, %arg12: memref<1x1xf32, #tpu.memory_space<smem>>, %arg13: memref<2x4xf32, #tpu.memory_space<vmem>>, %arg14: memref<2x4xf32, #tpu.memory_space<vmem>>) attributes {dimension_semantics = [#tpu.dimension_semantics<parallel>], iteration_bounds = array<i64: 1>, scalar_prefetch = 0 : i64, scratch_operands = 0 : i64, tpu.core_type = #tpu.core_type<tc>, window_params = [{transform_indices = @transform_0, window_bounds = array<i64: 2, 64>}, {pipeline_mode = #tpu.pipeline_mode<synchronous>, transform_indices = @transform_1, window_bounds = array<i64: 64, 32>}, {pipeline_mode = #tpu.pipeline_mode<synchronous>, transform_indices = @transform_2, window_bounds = array<i64: 1, 32>}, {pipeline_mode = #tpu.pipeline_mode<synchronous>, transform_indices = @transform_3, window_bounds = array<i64: 1, 32>}, {pipeline_mode = #tpu.pipeline_mode<synchronous>, transform_indices = @transform_4, window_bounds = array<i64: 1, 32>}, {pipeline_mode = #tpu.pipeline_mode<synchronous>, transform_indices = @transform_5, window_bounds = array<i64: 32, 32>}, {pipeline_mode = #tpu.pipeline_mode<synchronous>, transform_indices = @transform_6, window_bounds = array<i64: 1, 32>}, {pipeline_mode = #tpu.pipeline_mode<synchronous>, transform_indices = @transform_7, window_bounds = array<i64: 32, 32>}, {pipeline_mode = #tpu.pipeline_mode<synchronous>, transform_indices = @transform_8, window_bounds = array<i64: 1, 32>}, {pipeline_mode = #tpu.pipeline_mode<synchronous>, transform_indices = @transform_9, window_bounds = array<i64: 32, 4>}, {pipeline_mode = #tpu.pipeline_mode<synchronous>, transform_indices = @transform_10, window_bounds = array<i64: 1, 4>}, {transform_indices = @transform_11, window_bounds = array<i64: 1, 1>}, {transform_indices = @transform_12, window_bounds = array<i64: 2, 4>}, {transform_indices = @transform_13, window_bounds = array<i64: 2, 4>}]} {
    %c0 = arith.constant 0 : index
    %c0_0 = arith.constant 0 : index
    %0 = vector.load %arg1[%c0, %c0_0] : memref<2x64xf32, #tpu.memory_space<vmem>>, vector<2x64xf32>
    %c0_1 = arith.constant 0 : index
    %c0_2 = arith.constant 0 : index
    %1 = vector.load %arg2[%c0_1, %c0_2] : memref<64x32xf32, #tpu.memory_space<vmem>>, vector<64x32xf32>
    %cst = arith.constant dense<0.000000e+00> : vector<2x32xf32>
    %2 = tpu.matmul %0, %1, %cst {dimension_numbers = #tpu.dot_dimension_numbers<[1], [0], [0], [1], [0, 0, 1, 1], [], []>} : vector<2x64xf32>, vector<64x32xf32>, vector<2x32xf32> -> vector<2x32xf32>
    %c0_3 = arith.constant 0 : index
    %c0_4 = arith.constant 0 : index
    %3 = vector.load %arg3[%c0_3, %c0_4] : memref<1x32xf32, #tpu.memory_space<vmem>>, vector<1x32xf32>
    %4 = vector.broadcast %3 : vector<1x32xf32> to vector<2x32xf32>
    %5 = arith.addf %2, %4 : vector<2x32xf32>
    %cst_5 = arith.constant dense<0.000000e+00> : vector<2xf32>
    %6 = vector.multi_reduction <add>, %5, %cst_5 [1] : vector<2x32xf32> to vector<2xf32>
    %7 = vector.shape_cast %6 : vector<2xf32> to vector<2x1xf32>
    %cst_6 = arith.constant 3.200000e+01 : f32
    %8 = vector.broadcast %cst_6 : f32 to vector<2x1xf32>
    %9 = arith.divf %7, %8 : vector<2x1xf32>
    %10 = vector.broadcast %9 : vector<2x1xf32> to vector<2x32xf32>
    %11 = arith.subf %5, %10 : vector<2x32xf32>
    %12 = arith.mulf %11, %11 : vector<2x32xf32>
    %cst_7 = arith.constant dense<0.000000e+00> : vector<2xf32>
    %13 = vector.multi_reduction <add>, %12, %cst_7 [1] : vector<2x32xf32> to vector<2xf32>
    %14 = vector.shape_cast %13 : vector<2xf32> to vector<2x1xf32>
    %cst_8 = arith.constant 3.200000e+01 : f32
    %15 = vector.broadcast %cst_8 : f32 to vector<2x1xf32>
    %16 = arith.divf %14, %15 : vector<2x1xf32>
    %17 = vector.broadcast %9 : vector<2x1xf32> to vector<2x32xf32>
    %18 = arith.subf %5, %17 : vector<2x32xf32>
    %cst_9 = arith.constant 9.99999974E-6 : f32
    %19 = vector.broadcast %cst_9 : f32 to vector<2x1xf32>
    %20 = arith.addf %16, %19 : vector<2x1xf32>
    %21 = math.rsqrt %20 : vector<2x1xf32>
    %22 = vector.broadcast %21 : vector<2x1xf32> to vector<2x32xf32>
    %23 = arith.mulf %18, %22 : vector<2x32xf32>
    %c0_10 = arith.constant 0 : index
    %c0_11 = arith.constant 0 : index
    %24 = vector.load %arg4[%c0_10, %c0_11] : memref<1x32xf32, #tpu.memory_space<vmem>>, vector<1x32xf32>
    %25 = vector.broadcast %24 : vector<1x32xf32> to vector<2x32xf32>
    %26 = arith.mulf %23, %25 : vector<2x32xf32>
    %c0_12 = arith.constant 0 : index
    %c0_13 = arith.constant 0 : index
    %27 = vector.load %arg5[%c0_12, %c0_13] : memref<1x32xf32, #tpu.memory_space<vmem>>, vector<1x32xf32>
    %28 = vector.broadcast %27 : vector<1x32xf32> to vector<2x32xf32>
    %29 = arith.addf %26, %28 : vector<2x32xf32>
    %30 = math.tanh %29 : vector<2x32xf32>
    %c0_14 = arith.constant 0 : index
    %c0_15 = arith.constant 0 : index
    %31 = vector.load %arg6[%c0_14, %c0_15] : memref<32x32xf32, #tpu.memory_space<vmem>>, vector<32x32xf32>
    %cst_16 = arith.constant dense<0.000000e+00> : vector<2x32xf32>
    %32 = tpu.matmul %30, %31, %cst_16 {dimension_numbers = #tpu.dot_dimension_numbers<[1], [0], [0], [1], [0, 0, 1, 1], [], []>} : vector<2x32xf32>, vector<32x32xf32>, vector<2x32xf32> -> vector<2x32xf32>
    %c0_17 = arith.constant 0 : index
    %c0_18 = arith.constant 0 : index
    %33 = vector.load %arg7[%c0_17, %c0_18] : memref<1x32xf32, #tpu.memory_space<vmem>>, vector<1x32xf32>
    %34 = vector.broadcast %33 : vector<1x32xf32> to vector<2x32xf32>
    %35 = arith.addf %32, %34 : vector<2x32xf32>
    %cst_19 = arith.constant 0.000000e+00 : f32
    %36 = vector.broadcast %cst_19 : f32 to vector<2x32xf32>
    %37 = arith.maximumf %35, %36 : vector<2x32xf32>
    %c0_20 = arith.constant 0 : index
    %c0_21 = arith.constant 0 : index
    %38 = vector.load %arg8[%c0_20, %c0_21] : memref<32x32xf32, #tpu.memory_space<vmem>>, vector<32x32xf32>
    %cst_22 = arith.constant dense<0.000000e+00> : vector<2x32xf32>
    %39 = tpu.matmul %37, %38, %cst_22 {dimension_numbers = #tpu.dot_dimension_numbers<[1], [0], [0], [1], [0, 0, 1, 1], [], []>} : vector<2x32xf32>, vector<32x32xf32>, vector<2x32xf32> -> vector<2x32xf32>
    %c0_23 = arith.constant 0 : index
    %c0_24 = arith.constant 0 : index
    %40 = vector.load %arg9[%c0_23, %c0_24] : memref<1x32xf32, #tpu.memory_space<vmem>>, vector<1x32xf32>
    %41 = vector.broadcast %40 : vector<1x32xf32> to vector<2x32xf32>
    %42 = arith.addf %39, %41 : vector<2x32xf32>
    %cst_25 = arith.constant 0.000000e+00 : f32
    %43 = vector.broadcast %cst_25 : f32 to vector<2x32xf32>
    %44 = arith.maximumf %42, %43 : vector<2x32xf32>
    %c0_26 = arith.constant 0 : index
    %c0_27 = arith.constant 0 : index
    %45 = vector.load %arg10[%c0_26, %c0_27] : memref<32x4xf32, #tpu.memory_space<vmem>>, vector<32x4xf32>
    %cst_28 = arith.constant dense<0.000000e+00> : vector<2x4xf32>
    %46 = tpu.matmul %44, %45, %cst_28 {dimension_numbers = #tpu.dot_dimension_numbers<[1], [0], [0], [1], [0, 0, 1, 1], [], []>} : vector<2x32xf32>, vector<32x4xf32>, vector<2x4xf32> -> vector<2x4xf32>
    %c0_29 = arith.constant 0 : index
    %c0_30 = arith.constant 0 : index
    %47 = vector.load %arg11[%c0_29, %c0_30] : memref<1x4xf32, #tpu.memory_space<vmem>>, vector<1x4xf32>
    %48 = vector.broadcast %47 : vector<1x4xf32> to vector<2x4xf32>
    %49 = arith.addf %46, %48 : vector<2x4xf32>
    %50 = math.tanh %49 : vector<2x4xf32>
    %cst_31 = arith.constant 1.000000e+00 : f32
    %51 = vector.broadcast %cst_31 : f32 to vector<2x4xf32>
    %52 = arith.mulf %50, %51 : vector<2x4xf32>
    %cst_32 = arith.constant 0.000000e+00 : f32
    %53 = vector.broadcast %cst_32 : f32 to vector<2x4xf32>
    %54 = arith.addf %52, %53 : vector<2x4xf32>
    %c0_33 = arith.constant 0 : index
    %c0_34 = arith.constant 0 : index
    %55 = vector.load %arg13[%c0_33, %c0_34] : memref<2x4xf32, #tpu.memory_space<vmem>>, vector<2x4xf32>
    tpu.vector_store %arg13[%c0_33, %c0_34], %54 {strides = array<i32>} : memref<2x4xf32, #tpu.memory_space<vmem>>, vector<2x4xf32>,
    %cst_35 = arith.constant 1.000000e+00 : f32
    %56 = vector.broadcast %cst_35 : f32 to vector<2x4xf32>
    %c0_36 = arith.constant 0 : index
    %c0_37 = arith.constant 0 : index
    %57 = memref.load %arg12[%c0_36, %c0_37] : memref<1x1xf32, #tpu.memory_space<smem>>
    %58 = vector.broadcast %57 : f32 to vector<2x4xf32>
    %59 = arith.mulf %56, %58 : vector<2x4xf32>
    %c0_38 = arith.constant 0 : index
    %c0_39 = arith.constant 0 : index
    %60 = vector.load %arg14[%c0_38, %c0_39] : memref<2x4xf32, #tpu.memory_space<vmem>>, vector<2x4xf32>
    tpu.vector_store %arg14[%c0_38, %c0_39], %59 {strides = array<i32>} : memref<2x4xf32, #tpu.memory_space<vmem>>, vector<2x4xf32>,
    return
  }
  func.func @transform_0(%arg0: i32) -> (i32, i32) {
    %c0_i32 = arith.constant 0 : i32
    %c0_i32_0 = arith.constant 0 : i32
    return %arg0, %c0_i32 : i32, i32
  }
  func.func @transform_1(%arg0: i32) -> (i32, i32) {
    %c0_i32 = arith.constant 0 : i32
    %c0_i32_0 = arith.constant 0 : i32
    %c0_i32_1 = arith.constant 0 : i32
    return %c0_i32, %c0_i32_0 : i32, i32
  }
  func.func @transform_2(%arg0: i32) -> (i32, i32) {
    %c0_i32 = arith.constant 0 : i32
    %c0_i32_0 = arith.constant 0 : i32
    %c0_i32_1 = arith.constant 0 : i32
    return %c0_i32, %c0_i32_0 : i32, i32
  }
  func.func @transform_3(%arg0: i32) -> (i32, i32) {
    %c0_i32 = arith.constant 0 : i32
    %c0_i32_0 = arith.constant 0 : i32
    %c0_i32_1 = arith.constant 0 : i32
    return %c0_i32, %c0_i32_0 : i32, i32
  }
  func.func @transform_4(%arg0: i32) -> (i32, i32) {
    %c0_i32 = arith.constant 0 : i32
    %c0_i32_0 = arith.constant 0 : i32
    %c0_i32_1 = arith.constant 0 : i32
    return %c0_i32, %c0_i32_0 : i32, i32
  }
  func.func @transform_5(%arg0: i32) -> (i32, i32) {
    %c0_i32 = arith.constant 0 : i32
    %c0_i32_0 = arith.constant 0 : i32
    %c0_i32_1 = arith.constant 0 : i32
    return %c0_i32, %c0_i32_0 : i32, i32
  }
  func.func @transform_6(%arg0: i32) -> (i32, i32) {
    %c0_i32 = arith.constant 0 : i32
    %c0_i32_0 = arith.constant 0 : i32
    %c0_i32_1 = arith.constant 0 : i32
    return %c0_i32, %c0_i32_0 : i32, i32
  }
  func.func @transform_7(%arg0: i32) -> (i32, i32) {
    %c0_i32 = arith.constant 0 : i32
    %c0_i32_0 = arith.constant 0 : i32
    %c0_i32_1 = arith.constant 0 : i32
    return %c0_i32, %c0_i32_0 : i32, i32
  }
  func.func @transform_8(%arg0: i32) -> (i32, i32) {
    %c0_i32 = arith.constant 0 : i32
    %c0_i32_0 = arith.constant 0 : i32
    %c0_i32_1 = arith.constant 0 : i32
    return %c0_i32, %c0_i32_0 : i32, i32
  }
  func.func @transform_9(%arg0: i32) -> (i32, i32) {
    %c0_i32 = arith.constant 0 : i32
    %c0_i32_0 = arith.constant 0 : i32
    %c0_i32_1 = arith.constant 0 : i32
    return %c0_i32, %c0_i32_0 : i32, i32
  }
  func.func @transform_10(%arg0: i32) -> (i32, i32) {
    %c0_i32 = arith.constant 0 : i32
    %c0_i32_0 = arith.constant 0 : i32
    %c0_i32_1 = arith.constant 0 : i32
    return %c0_i32, %c0_i32_0 : i32, i32
  }
  func.func @transform_11(%arg0: i32) -> (i32, i32) {
    %c0_i32 = arith.constant 0 : i32
    %c0_i32_0 = arith.constant 0 : i32
    %c0_i32_1 = arith.constant 0 : i32
    return %c0_i32, %c0_i32_0 : i32, i32
  }
  func.func @transform_12(%arg0: i32) -> (i32, i32) {
    %c0_i32 = arith.constant 0 : i32
    %c0_i32_0 = arith.constant 0 : i32
    return %arg0, %c0_i32 : i32, i32
  }
  func.func @transform_13(%arg0: i32) -> (i32, i32) {
    %c0_i32 = arith.constant 0 : i32
    %c0_i32_0 = arith.constant 0 : i32
    return %arg0, %c0_i32 : i32, i32
  }
}

</mosaic_0001>

<llo_original>
// kernel: tpu_custom_call.1
$region0: #{tpu_custom_call.1}
  #allocation0 [shape = 'u32[]', space=smem, size = 0x4, offset = 0x4, fixed_abs, tag = 'smem constant byte address 0x4 - core index']
  #allocation1 [shape = 'u32[144,128]{1,0:T(1,128)}', space=vmem, size = 0x12000, scoped, tag = 'internal scratch']
  #allocation2 [shape = 'f32[1,1]{1,0:T(1,128)S(6)}', space=smem, size = 0x200, scoped, tag = 'scoped memory for tpu_custom_call.1']
  %s0 = inlined_call_operand.vmem [shape: f32[2,64], index: 0, kind: input, shape index: {}]
  %s1 = inlined_call_operand.vmem [shape: f32[64,32], index: 1, kind: input, shape index: {}]
  %s2 = inlined_call_operand.vmem [shape: f32[1,32], index: 2, kind: input, shape index: {}]
  %s3 = inlined_call_operand.vmem [shape: f32[1,32], index: 3, kind: input, shape index: {}]
  %s4 = inlined_call_operand.vmem [shape: f32[1,32], index: 4, kind: input, shape index: {}]
  %s5 = inlined_call_operand.vmem [shape: f32[32,32], index: 5, kind: input, shape index: {}]
  %s6 = inlined_call_operand.vmem [shape: f32[1,32], index: 6, kind: input, shape index: {}]
  %s7 = inlined_call_operand.vmem [shape: f32[32,32], index: 7, kind: input, shape index: {}]
  %s8 = inlined_call_operand.vmem [shape: f32[1,32], index: 8, kind: input, shape index: {}]
  %s9 = inlined_call_operand.vmem [shape: f32[32,4], index: 9, kind: input, shape index: {}]
  %s10 = inlined_call_operand.vmem [shape: f32[1,4], index: 10, kind: input, shape index: {}]
  %s11 = inlined_call_operand.<no memory space> [shape: f32[1,1], index: 11, kind: input, shape index: {}]
  %s12 = inlined_call_operand.hbm [shape: f32[2,4], index: 12, kind: output, shape index: {0}]
  %s13 = inlined_call_operand.hbm [shape: f32[2,4], index: 13, kind: output, shape index: {1}]
  %14 = xla_tuple %s12, %s13
  %s15 = sld [smem:[#allocation0]]
  $region66: #{tpu_custom_call.1} parent=0
    _
  %s17 = ssub.s32 1, %s15
  %s18 = scalar_select 0, %s17, %s15
  %19 = sst [smem:[#allocation2]] %s11
  $region1: #{tpu_custom_call.1} parent=0
    #allocation3 [shape = 'u8[1024]{0}', space=vmem, size = 0x400, scoped, tag = 'output window, operand 0, single buffered']
    #allocation4 [shape = 's32[1]{0}', space=sflag, size = 0x4, scoped, tag = 'scoped memory for tpu_custom_call.1']
    #allocation5 [shape = 'u8[1024]{0}', space=vmem, size = 0x400, scoped, tag = 'output window, operand 1, single buffered']
    #allocation6 [shape = 's32[1]{0}', space=sflag, size = 0x4, scoped, tag = 'scoped memory for tpu_custom_call.1']
    %20 = vsyncpa [#allocation4], 0
    %21 = vsyncpa [#allocation6], 0
    // Predicated region
    $region2: #{tpu_custom_call.1} parent=1 // pred_check
      _
    $region3: #{tpu_custom_call.1} parent=1 // pred_check_branch
      %23 = sbr.rel (0) target = $region5
    $region4: #{tpu_custom_call.1} parent=1 // pred_region
      _
    $region5: #{tpu_custom_call.1} parent=1 // pred_fallthru
      _
    // Predicated region
    $region6: #{tpu_custom_call.1} parent=1 // pred_check
      _
    $region7: #{tpu_custom_call.1} parent=1 // pred_check_branch
      %25 = sbr.rel (0) target = $region9
    $region8: #{tpu_custom_call.1} parent=1 // pred_region
      _
    $region9: #{tpu_custom_call.1} parent=1 // pred_fallthru
      _
    // Predicated region
    $region10: #{tpu_custom_call.1} parent=1 // pred_check
      _
    $region11: #{tpu_custom_call.1} parent=1 // pred_check_branch
      %27 = sbr.rel (0) target = $region13
    $region12: #{tpu_custom_call.1} parent=1 // pred_region
      _
    $region13: #{tpu_custom_call.1} parent=1 // pred_fallthru
      _
    // Predicated region
    $region14: #{tpu_custom_call.1} parent=1 // pred_check
      _
    $region15: #{tpu_custom_call.1} parent=1 // pred_check_branch
      %29 = sbr.rel (0) target = $region17
    $region16: #{tpu_custom_call.1} parent=1 // pred_region
      _
    $region17: #{tpu_custom_call.1} parent=1 // pred_fallthru
      _
    // Predicated region
    $region18: #{tpu_custom_call.1} parent=1 // pred_check
      _
    $region19: #{tpu_custom_call.1} parent=1 // pred_check_branch
      %31 = sbr.rel (0) target = $region21
    $region20: #{tpu_custom_call.1} parent=1 // pred_region
      _
    $region21: #{tpu_custom_call.1} parent=1 // pred_fallthru
      _
    // Predicated region
    $region22: #{tpu_custom_call.1} parent=1 // pred_check
      _
    $region23: #{tpu_custom_call.1} parent=1 // pred_check_branch
      %33 = sbr.rel (0) target = $region25
    $region24: #{tpu_custom_call.1} parent=1 // pred_region
      _
    $region25: #{tpu_custom_call.1} parent=1 // pred_fallthru
      _
    // Predicated region
    $region26: #{tpu_custom_call.1} parent=1 // pred_check
      _
    $region27: #{tpu_custom_call.1} parent=1 // pred_check_branch
      %35 = sbr.rel (0) target = $region29
    $region28: #{tpu_custom_call.1} parent=1 // pred_region
      _
    $region29: #{tpu_custom_call.1} parent=1 // pred_fallthru
      _
    // Predicated region
    $region30: #{tpu_custom_call.1} parent=1 // pred_check
      _
    $region31: #{tpu_custom_call.1} parent=1 // pred_check_branch
      %37 = sbr.rel (0) target = $region33
    $region32: #{tpu_custom_call.1} parent=1 // pred_region
      _
    $region33: #{tpu_custom_call.1} parent=1 // pred_fallthru
      _
    // Predicated region
    $region34: #{tpu_custom_call.1} parent=1 // pred_check
      _
    $region35: #{tpu_custom_call.1} parent=1 // pred_check_branch
      %39 = sbr.rel (0) target = $region37
    $region36: #{tpu_custom_call.1} parent=1 // pred_region
      _
    $region37: #{tpu_custom_call.1} parent=1 // pred_fallthru
      _
    // Predicated region
    $region38: #{tpu_custom_call.1} parent=1 // pred_check
      _
    $region39: #{tpu_custom_call.1} parent=1 // pred_check_branch
      %41 = sbr.rel (0) target = $region41
    $region40: #{tpu_custom_call.1} parent=1 // pred_region
      _
    $region41: #{tpu_custom_call.1} parent=1 // pred_fallthru
      _
    // Predicated region
    $region42: #{tpu_custom_call.1} parent=1 // pred_check
      _
    $region43: #{tpu_custom_call.1} parent=1 // pred_check_branch
      %43 = sbr.rel (0) target = $region45
    $region44: #{tpu_custom_call.1} parent=1 // pred_region
      _
    $region45: #{tpu_custom_call.1} parent=1 // pred_fallthru
      _
    // Predicated region
    $region46: #{tpu_custom_call.1} parent=1 // pred_check
      _
    $region47: #{tpu_custom_call.1} parent=1 // pred_check_branch
      %45 = sbr.rel (0) target = $region49
    $region48: #{tpu_custom_call.1} parent=1 // pred_region
      _
    $region49: #{tpu_custom_call.1} parent=1 // pred_fallthru
      _
    %v46 = vld [vmem:[%s0] sm:$0x3]
    %v47 = vld [vmem:[%s1] sm:$0xff]
    %v48 = vld [vmem:[%s1 + $0x8] sm:$0xff]
    %v49 = vld [vmem:[%s1 + $0x10] sm:$0xff]
    %v50 = vld [vmem:[%s1 + $0x18] sm:$0xff]
    %v51 = vld [vmem:[%s1 + $0x20] sm:$0xff]
    %v52 = vld [vmem:[%s1 + $0x28] sm:$0xff]
    %v53 = vld [vmem:[%s1 + $0x30] sm:$0xff]
    %v54 = vld [vmem:[%s1 + $0x38] sm:$0xff]
    %v55 = vld [vmem:[%s2] sm:$0x1]
    %v57 = vlaneseq
    %v58 = vshrl.u32 %v57, 7
    %v59 = vsub.s32 0, %v58
    %v60 = vrot.slane %v55, %v59
    %vm62 = vcmask 523264
    %v64 = vsel %vm62, %v46, 0
    %66 = vmatprep.subr.mxu0 0.0
    %67 = vmatpush1.msra.mxu0 0.0
    %68 = vmatprep.subr.mxu0 0.0
    %69 = vmatpush1.msra.mxu0 0.0
    %70 = vmatprep.subr.mxu0 0.0
    %71 = vmatpush1.msra.mxu0 0.0
    %72 = vmatprep.subr.mxu0 0.0
    %73 = vmatpush1.msra.mxu0 0.0
    %74 = vmatprep.subr.mxu0 0.0
    %75 = vmatpush1.msra.mxu0 0.0
    %76 = vmatprep.subr.mxu0 0.0
    %77 = vmatpush1.msra.mxu0 0.0
    %78 = vmatprep.subr.mxu0 0.0
    %79 = vmatpush1.msra.mxu0 0.0
    %80 = vmatprep.subr.mxu0 0.0
    %81 = vmatpush1.msra.mxu0 0.0
    %82 = vmatprep.subr.mxu0 0.0
    %83 = vmatpush1.msra.mxu0 %v54
    %84 = vmatprep.subr.mxu0 0.0
    %85 = vmatpush1.msra.mxu0 %v53
    %86 = vmatprep.subr.mxu0 0.0
    %87 = vmatpush1.msra.mxu0 %v52
    %88 = vmatprep.subr.mxu0 0.0
    %89 = vmatpush1.msra.mxu0 %v51
    %90 = vmatprep.subr.mxu0 0.0
    %91 = vmatpush1.msra.mxu0 %v50
    %92 = vmatprep.subr.mxu0 0.0
    %93 = vmatpush1.msra.mxu0 %v49
    %94 = vmatprep.subr.mxu0 0.0
    %95 = vmatpush1.msra.mxu0 %v48
    %96 = vmatprep.subr.mxu0 0.0
    %97 = vmatpush1.msra.mxu0 %v47
    %98 = vmatprep.subr.mxu0 0.0
    %99 = vmatpush2.msra.mxu0 0.0
    %100 = vmatprep.subr.mxu0 0.0
    %101 = vmatpush2.msra.mxu0 0.0
    %102 = vmatprep.subr.mxu0 0.0
    %103 = vmatpush2.msra.mxu0 0.0
    %104 = vmatprep.subr.mxu0 0.0
    %105 = vmatpush2.msra.mxu0 0.0
    %106 = vmatprep.subr.mxu0 0.0
    %107 = vmatpush2.msra.mxu0 0.0
    %108 = vmatprep.subr.mxu0 0.0
    %109 = vmatpush2.msra.mxu0 0.0
    %110 = vmatprep.subr.mxu0 0.0
    %111 = vmatpush2.msra.mxu0 0.0
    %112 = vmatprep.subr.mxu0 0.0
    %113 = vmatpush2.msra.mxu0 0.0
    %114 = vmatprep.subr.mxu0 0.0
    %115 = vmatpush2.msra.mxu0 0.0
    %116 = vmatprep.subr.mxu0 0.0
    %117 = vmatpush2.msra.mxu0 0.0
    %118 = vmatprep.subr.mxu0 0.0
    %119 = vmatpush2.msra.mxu0 0.0
    %120 = vmatprep.subr.mxu0 0.0
    %121 = vmatpush2.msra.mxu0 0.0
    %122 = vmatprep.subr.mxu0 0.0
    %123 = vmatpush2.msra.mxu0 0.0
    %124 = vmatprep.subr.mxu0 0.0
    %125 = vmatpush2.msra.mxu0 0.0
    %126 = vmatprep.subr.mxu0 0.0
    %127 = vmatpush2.msra.mxu0 0.0
    %128 = vmatprep.subr.mxu0 0.0
    %129 = vmatpush2.msra.mxu0 0.0
    %130 = vmatprep.mubr.f32.mxu0 0.0
    %131 = vmatmul.mubr.f32.gmra.mxu0 %v64
    %v132 = vpop.f32.mrf.mxu0
    %v133 = vadd.f32 %v60, %v132
    %v134 = vpop.f32.mrf.mxu0
    %135 = vdwg.mxu0
    %vm136 = vcmask 254976
    %v137 = vsel %vm136, %v133, 0.0
    %138 = vadd.xlane.f32.xlu0 %v137
    %v139 = vpop.xlane.xlu0 %138
    %v140 = vrcp.pop 32.0
    %v141 = vmul.f32 %v139, %v140
    %v142 = vsub.f32 %v133, %v141
    %v143 = vmul.f32 %v142, %v142
    %v144 = vsel %vm136, %v143, 0.0
    %145 = vadd.xlane.f32.xlu0 %v144
    %v146 = vpop.xlane.xlu0 %145
    %v147 = vmul.f32 %v146, %v140
    %v148 = vadd.f32 %v147, 1e-05
    %v149 = vrsqrt.pop %v148
    %v150 = vmul.f32 %v142, %v149
    %v151 = vld [vmem:[%s3] sm:$0x1]
    %v153 = vlaneseq
    %v154 = vshrl.u32 %v153, 7
    %v155 = vsub.s32 0, %v154
    %v156 = vrot.slane %v151, %v155
    %v158 = vmul.f32 %v150, %v156
    %v159 = vld [vmem:[%s4] sm:$0x1]
    %v161 = vlaneseq
    %v162 = vshrl.u32 %v161, 7
    %v163 = vsub.s32 0, %v162
    %v164 = vrot.slane %v159, %v163
    %v166 = vadd.f32 %v158, %v164
    %v167 = vtanh.pop %v166
    %v168 = vld [vmem:[%s5] sm:$0xff]
    %v169 = vld [vmem:[%s5 + $0x8] sm:$0xff]
    %v170 = vld [vmem:[%s5 + $0x10] sm:$0xff]
    %v171 = vld [vmem:[%s5 + $0x18] sm:$0xff]
    %v172 = vld [vmem:[%s6] sm:$0x1]
    %v174 = vlaneseq
    %v175 = vshrl.u32 %v174, 7
    %v176 = vsub.s32 0, %v175
    %v177 = vrot.slane %v172, %v176
    %vm179 = vcmask 261120
    %v181 = vsel %vm179, %v167, 0
    %183 = vmatprep.subr.mxu0 0.0
    %184 = vmatpush1.msra.mxu0 0.0
    %185 = vmatprep.subr.mxu0 0.0
    %186 = vmatpush1.msra.mxu0 0.0
    %187 = vmatprep.subr.mxu0 0.0
    %188 = vmatpush1.msra.mxu0 0.0
    %189 = vmatprep.subr.mxu0 0.0
    %190 = vmatpush1.msra.mxu0 0.0
    %191 = vmatprep.subr.mxu0 0.0
    %192 = vmatpush1.msra.mxu0 0.0
    %193 = vmatprep.subr.mxu0 0.0
    %194 = vmatpush1.msra.mxu0 0.0
    %195 = vmatprep.subr.mxu0 0.0
    %196 = vmatpush1.msra.mxu0 0.0
    %197 = vmatprep.subr.mxu0 0.0
    %198 = vmatpush1.msra.mxu0 0.0
    %199 = vmatprep.subr.mxu0 0.0
    %200 = vmatpush1.msra.mxu0 0.0
    %201 = vmatprep.subr.mxu0 0.0
    %202 = vmatpush1.msra.mxu0 0.0
    %203 = vmatprep.subr.mxu0 0.0
    %204 = vmatpush1.msra.mxu0 0.0
    %205 = vmatprep.subr.mxu0 0.0
    %206 = vmatpush1.msra.mxu0 0.0
    %207 = vmatprep.subr.mxu0 0.0
    %208 = vmatpush1.msra.mxu0 %v171
    %209 = vmatprep.subr.mxu0 0.0
    %210 = vmatpush1.msra.mxu0 %v170
    %211 = vmatprep.subr.mxu0 0.0
    %212 = vmatpush1.msra.mxu0 %v169
    %213 = vmatprep.subr.mxu0 0.0
    %214 = vmatpush1.msra.mxu0 %v168
    %215 = vmatprep.subr.mxu0 0.0
    %216 = vmatpush2.msra.mxu0 0.0
    %217 = vmatprep.subr.mxu0 0.0
    %218 = vmatpush2.msra.mxu0 0.0
    %219 = vmatprep.subr.mxu0 0.0
    %220 = vmatpush2.msra.mxu0 0.0
    %221 = vmatprep.subr.mxu0 0.0
    %222 = vmatpush2.msra.mxu0 0.0
    %223 = vmatprep.subr.mxu0 0.0
    %224 = vmatpush2.msra.mxu0 0.0
    %225 = vmatprep.subr.mxu0 0.0
    %226 = vmatpush2.msra.mxu0 0.0
    %227 = vmatprep.subr.mxu0 0.0
    %228 = vmatpush2.msra.mxu0 0.0
    %229 = vmatprep.subr.mxu0 0.0
    %230 = vmatpush2.msra.mxu0 0.0
    %231 = vmatprep.subr.mxu0 0.0
    %232 = vmatpush2.msra.mxu0 0.0
    %233 = vmatprep.subr.mxu0 0.0
    %234 = vmatpush2.msra.mxu0 0.0
    %235 = vmatprep.subr.mxu0 0.0
    %236 = vmatpush2.msra.mxu0 0.0
    %237 = vmatprep.subr.mxu0 0.0
    %238 = vmatpush2.msra.mxu0 0.0
    %239 = vmatprep.subr.mxu0 0.0
    %240 = vmatpush2.msra.mxu0 0.0
    %241 = vmatprep.subr.mxu0 0.0
    %242 = vmatpush2.msra.mxu0 0.0
    %243 = vmatprep.subr.mxu0 0.0
    %244 = vmatpush2.msra.mxu0 0.0
    %245 = vmatprep.subr.mxu0 0.0
    %246 = vmatpush2.msra.mxu0 0.0
    %247 = vmatprep.mubr.f32.mxu0 0.0
    %248 = vmatmul.mubr.f32.gmra.mxu0 %v181
    %v249 = vpop.f32.mrf.mxu0
    %v250 = vadd.f32 %v177, %v249
    %v251 = vpop.f32.mrf.mxu0
    %252 = vdwg.mxu0
    %v253 = vmax.f32 %v250, 0.0
    %v254 = vld [vmem:[%s7] sm:$0xff]
    %v255 = vld [vmem:[%s7 + $0x8] sm:$0xff]
    %v256 = vld [vmem:[%s7 + $0x10] sm:$0xff]
    %v257 = vld [vmem:[%s7 + $0x18] sm:$0xff]
    %v258 = vld [vmem:[%s8] sm:$0x1]
    %v260 = vlaneseq
    %v261 = vshrl.u32 %v260, 7
    %v262 = vsub.s32 0, %v261
    %v263 = vrot.slane %v258, %v262
    %v266 = vsel %vm179, %v253, 0
    %268 = vmatprep.subr.mxu0 0.0
    %269 = vmatpush1.msra.mxu0 0.0
    %270 = vmatprep.subr.mxu0 0.0
    %271 = vmatpush1.msra.mxu0 0.0
    %272 = vmatprep.subr.mxu0 0.0
    %273 = vmatpush1.msra.mxu0 0.0
    %274 = vmatprep.subr.mxu0 0.0
    %275 = vmatpush1.msra.mxu0 0.0
    %276 = vmatprep.subr.mxu0 0.0
    %277 = vmatpush1.msra.mxu0 0.0
    %278 = vmatprep.subr.mxu0 0.0
    %279 = vmatpush1.msra.mxu0 0.0
    %280 = vmatprep.subr.mxu0 0.0
    %281 = vmatpush1.msra.mxu0 0.0
    %282 = vmatprep.subr.mxu0 0.0
    %283 = vmatpush1.msra.mxu0 0.0
    %284 = vmatprep.subr.mxu0 0.0
    %285 = vmatpush1.msra.mxu0 0.0
    %286 = vmatprep.subr.mxu0 0.0
    %287 = vmatpush1.msra.mxu0 0.0
    %288 = vmatprep.subr.mxu0 0.0
    %289 = vmatpush1.msra.mxu0 0.0
    %290 = vmatprep.subr.mxu0 0.0
    %291 = vmatpush1.msra.mxu0 0.0
    %292 = vmatprep.subr.mxu0 0.0
    %293 = vmatpush1.msra.mxu0 %v257
    %294 = vmatprep.subr.mxu0 0.0
    %295 = vmatpush1.msra.mxu0 %v256
    %296 = vmatprep.subr.mxu0 0.0
    %297 = vmatpush1.msra.mxu0 %v255
    %298 = vmatprep.subr.mxu0 0.0
    %299 = vmatpush1.msra.mxu0 %v254
    %300 = vmatprep.subr.mxu0 0.0
    %301 = vmatpush2.msra.mxu0 0.0
    %302 = vmatprep.subr.mxu0 0.0
    %303 = vmatpush2.msra.mxu0 0.0
    %304 = vmatprep.subr.mxu0 0.0
    %305 = vmatpush2.msra.mxu0 0.0
    %306 = vmatprep.subr.mxu0 0.0
    %307 = vmatpush2.msra.mxu0 0.0
    %308 = vmatprep.subr.mxu0 0.0
    %309 = vmatpush2.msra.mxu0 0.0
    %310 = vmatprep.subr.mxu0 0.0
    %311 = vmatpush2.msra.mxu0 0.0
    %312 = vmatprep.subr.mxu0 0.0
    %313 = vmatpush2.msra.mxu0 0.0
    %314 = vmatprep.subr.mxu0 0.0
    %315 = vmatpush2.msra.mxu0 0.0
    %316 = vmatprep.subr.mxu0 0.0
    %317 = vmatpush2.msra.mxu0 0.0
    %318 = vmatprep.subr.mxu0 0.0
    %319 = vmatpush2.msra.mxu0 0.0
    %320 = vmatprep.subr.mxu0 0.0
    %321 = vmatpush2.msra.mxu0 0.0
    %322 = vmatprep.subr.mxu0 0.0
    %323 = vmatpush2.msra.mxu0 0.0
    %324 = vmatprep.subr.mxu0 0.0
    %325 = vmatpush2.msra.mxu0 0.0
    %326 = vmatprep.subr.mxu0 0.0
    %327 = vmatpush2.msra.mxu0 0.0
    %328 = vmatprep.subr.mxu0 0.0
    %329 = vmatpush2.msra.mxu0 0.0
    %330 = vmatprep.subr.mxu0 0.0
    %331 = vmatpush2.msra.mxu0 0.0
    %332 = vmatprep.mubr.f32.mxu0 0.0
    %333 = vmatmul.mubr.f32.gmra.mxu0 %v266
    %v334 = vpop.f32.mrf.mxu0
    %v335 = vadd.f32 %v263, %v334
    %v336 = vpop.f32.mrf.mxu0
    %337 = vdwg.mxu0
    %v338 = vmax.f32 %v335, 0.0
    %v339 = vld [vmem:[%s9] sm:$0xff]
    %v340 = vld [vmem:[%s9 + $0x8] sm:$0xff]
    %v341 = vld [vmem:[%s9 + $0x10] sm:$0xff]
    %v342 = vld [vmem:[%s9 + $0x18] sm:$0xff]
    %v343 = vld [vmem:[%s10] sm:$0x1]
    %v345 = vlaneseq
    %v346 = vshrl.u32 %v345, 7
    %v347 = vsub.s32 0, %v346
    %v348 = vrot.slane %v343, %v347
    %v351 = vsel %vm179, %v338, 0
    %353 = vmatprep.subr.mxu0 0.0
    %354 = vmatpush1.msra.mxu0 0.0
    %355 = vmatprep.subr.mxu0 0.0
    %356 = vmatpush1.msra.mxu0 0.0
    %357 = vmatprep.subr.mxu0 0.0
    %358 = vmatpush1.msra.mxu0 0.0
    %359 = vmatprep.subr.mxu0 0.0
    %360 = vmatpush1.msra.mxu0 0.0
    %361 = vmatprep.subr.mxu0 0.0
    %362 = vmatpush1.msra.mxu0 0.0
    %363 = vmatprep.subr.mxu0 0.0
    %364 = vmatpush1.msra.mxu0 0.0
    %365 = vmatprep.subr.mxu0 0.0
    %366 = vmatpush1.msra.mxu0 0.0
    %367 = vmatprep.subr.mxu0 0.0
    %368 = vmatpush1.msra.mxu0 0.0
    %369 = vmatprep.subr.mxu0 0.0
    %370 = vmatpush1.msra.mxu0 0.0
    %371 = vmatprep.subr.mxu0 0.0
    %372 = vmatpush1.msra.mxu0 0.0
    %373 = vmatprep.subr.mxu0 0.0
    %374 = vmatpush1.msra.mxu0 0.0
    %375 = vmatprep.subr.mxu0 0.0
    %376 = vmatpush1.msra.mxu0 0.0
    %377 = vmatprep.subr.mxu0 0.0
    %378 = vmatpush1.msra.mxu0 %v342
    %379 = vmatprep.subr.mxu0 0.0
    %380 = vmatpush1.msra.mxu0 %v341
    %381 = vmatprep.subr.mxu0 0.0
    %382 = vmatpush1.msra.mxu0 %v340
    %383 = vmatprep.subr.mxu0 0.0
    %384 = vmatpush1.msra.mxu0 %v339
    %385 = vmatprep.subr.mxu0 0.0
    %386 = vmatpush2.msra.mxu0 0.0
    %387 = vmatprep.subr.mxu0 0.0
    %388 = vmatpush2.msra.mxu0 0.0
    %389 = vmatprep.subr.mxu0 0.0
    %390 = vmatpush2.msra.mxu0 0.0
    %391 = vmatprep.subr.mxu0 0.0
    %392 = vmatpush2.msra.mxu0 0.0
    %393 = vmatprep.subr.mxu0 0.0
    %394 = vmatpush2.msra.mxu0 0.0
    %395 = vmatprep.subr.mxu0 0.0
    %396 = vmatpush2.msra.mxu0 0.0
    %397 = vmatprep.subr.mxu0 0.0
    %398 = vmatpush2.msra.mxu0 0.0
    %399 = vmatprep.subr.mxu0 0.0
    %400 = vmatpush2.msra.mxu0 0.0
    %401 = vmatprep.subr.mxu0 0.0
    %402 = vmatpush2.msra.mxu0 0.0
    %403 = vmatprep.subr.mxu0 0.0
    %404 = vmatpush2.msra.mxu0 0.0
    %405 = vmatprep.subr.mxu0 0.0
    %406 = vmatpush2.msra.mxu0 0.0
    %407 = vmatprep.subr.mxu0 0.0
    %408 = vmatpush2.msra.mxu0 0.0
    %409 = vmatprep.subr.mxu0 0.0
    %410 = vmatpush2.msra.mxu0 0.0
    %411 = vmatprep.subr.mxu0 0.0
    %412 = vmatpush2.msra.mxu0 0.0
    %413 = vmatprep.subr.mxu0 0.0
    %414 = vmatpush2.msra.mxu0 0.0
    %415 = vmatprep.subr.mxu0 0.0
    %416 = vmatpush2.msra.mxu0 0.0
    %417 = vmatprep.mubr.f32.mxu0 0.0
    %418 = vmatmul.mubr.f32.gmra.mxu0 %v351
    %v419 = vpop.f32.mrf.mxu0
    %v420 = vadd.f32 %v348, %v419
    %v421 = vpop.f32.mrf.mxu0
    %422 = vdwg.mxu0
    %v423 = vtanh.pop %v420
    %v424 = vadd.f32 %v423, 0.0
    %vm425 = vcmask 25600
    %426 = vst.msk [vmem:[#allocation3] sm:$0x3] %vm425, %v424
    %s427 = sld [smem:[#allocation2]]
    %v428 = vstv %s427
    %429 = vst.msk [vmem:[#allocation5] sm:$0x3] %vm425, %v428
    // Predicated region
    $region50: #{tpu_custom_call.1} parent=1 // pred_check
      _
    $region51: #{tpu_custom_call.1} parent=1 // pred_check_branch
      %431 = sbr.rel (0) target = $region53
    $region52: #{tpu_custom_call.1} parent=1 // pred_region
      %s433 = ssub.s32 32, 32
      %434 = vsyncadd [#allocation4], %s433
      %s436 = sshll.u32 [#allocation3], 4
      %s437 = int_to_ptr.vmem [resolvable:$true] %s436
      %439 = dma.vmem_to_hbm [thread:$0]  %s437, 32, %s12, [#allocation4]
    $region53: #{tpu_custom_call.1} parent=1 // pred_fallthru
      _
    // Predicated region
    $region54: #{tpu_custom_call.1} parent=1 // pred_check
      _
    $region55: #{tpu_custom_call.1} parent=1 // pred_check_branch
      %441 = sbr.rel (0) target = $region57
    $region56: #{tpu_custom_call.1} parent=1 // pred_region
      %s443 = ssub.s32 32, 32
      %444 = vsyncadd [#allocation6], %s443
      %s446 = sshll.u32 [#allocation5], 4
      %s447 = int_to_ptr.vmem [resolvable:$true] %s446
      %449 = dma.vmem_to_hbm [thread:$0]  %s447, 32, %s13, [#allocation6]
    $region57: #{tpu_custom_call.1} parent=1 // pred_fallthru
      _
    // Predicated region
    $region58: #{tpu_custom_call.1} parent=1 // pred_check
      _
    $region59: #{tpu_custom_call.1} parent=1 // pred_check_branch
      %451 = sbr.rel (0) target = $region61
    $region60: #{tpu_custom_call.1} parent=1 // pred_region
      %452 = dma.done [#allocation4], 32
    $region61: #{tpu_custom_call.1} parent=1 // pred_fallthru
      _
    // Predicated region
    $region62: #{tpu_custom_call.1} parent=1 // pred_check
      _
    $region63: #{tpu_custom_call.1} parent=1 // pred_check_branch
      %454 = sbr.rel (0) target = $region65
    $region64: #{tpu_custom_call.1} parent=1 // pred_region
      %455 = dma.done [#allocation6], 32
    $region65: #{tpu_custom_call.1} parent=1 // pred_fallthru
      _
    %456 = vsyncpa [#allocation4], 1
    %457 = vsyncpa [#allocation6], 1

</llo_original>
